<compile_context>
chip_gen: v6e
topology: v6e:2x2x1
jax: 0.10.0
libtpu: 0.0.40
codegen_flags: <defaults>
</compile_context>

<pallas_src>
import functools

import jax
import jax.numpy as jnp
from jax import lax
from jax.experimental import pallas as pl
from jax.experimental.pallas import tpu as pltpu


_SLAB = 64  # rows per inner slab; multiple of f32 (8) and bf16 (16) sublane packs


def _round_up(x, m):
    return ((x + m - 1) // m) * m


def _num_tensorcores(default=2):
    """Best-effort TensorCore-per-chip count (2 on v7x, 1 on v5e/v6e)."""
    try:
        info = pltpu.get_tpu_info()
        for attr in ("num_cores", "num_tensorcores", "tensorcores_per_chip",
                     "cores_per_chip"):
            v = getattr(info, attr, None)
            if v is not None:
                v = int(v)
                if v > 0:
                    return min(v, 8)
    except Exception:
        pass
    try:
        v = getattr(jax.devices()[0], "num_cores", None)
        if v is not None:
            v = int(v)
            if v > 0:
                return min(v, 8)
    except Exception:
        pass
    # A core-split axis is a harmless sequential loop on single-TC chips.
    return default


def _triplet_loss_kernel(x_ref, out_ref, acc_ref, *, margin, B,
                         steps_per_core, n_tiles, has_tail, compute_dtype):
    """One grid step: fold one (2, tm, D) tile into the (8, D) f32 accumulator.

    x_ref:   (2, tm, D) stacked [pos; neg] tile (input dtype).
    acc_ref: (8, D) f32 per-core VMEM accumulator.
    out_ref: (1, 8, D) f32 per-core partial (written lane-dense on last step).
    """
    c = pl.program_id(0)          # core-split axis ("parallel")
    i = pl.program_id(1)          # sequential reduction axis ("arbitrary")

    tm = x_ref.shape[1]
    D = x_ref.shape[2]
    n_slabs = tm // _SLAB
    unroll = n_slabs if n_slabs <= 8 else 8

    @pl.when(i == 0)
    def _():
        acc_ref[...] = jnp.zeros_like(acc_ref)

    tile_idx = c * steps_per_core + i

    def reduce_tile(mask_rows):
        # Stream 64-row slabs through vregs; never materialize (tm, D) f32.
        def body(s, carry):
            r0 = pl.multiple_of(s * _SLAB, _SLAB)
            pos = x_ref[0, pl.ds(r0, _SLAB), :].astype(compute_dtype)
            neg = x_ref[1, pl.ds(r0, _SLAB), :].astype(compute_dtype)
            l = jnp.maximum(margin + pos - neg, 0.0)
            if mask_rows:
                # Only the tail tile pays for the mask.
                row = (tile_idx * tm + r0
                       + lax.broadcasted_iota(jnp.int32, l.shape, 0))
                l = jnp.where(row < B, l, 0.0)
            l32 = l.astype(jnp.float32)
            # Fold 64 rows into 8 sublanes with pure VPU adds.
            return carry + l32.reshape(_SLAB // 8, 8, D).sum(axis=0)

        return lax.fori_loop(0, n_slabs, body,
                             jnp.zeros((8, D), jnp.float32), unroll=unroll)

    if has_tail:
        @pl.when(tile_idx < n_tiles - 1)      # steady-state: no mask
        def _():
            acc_ref[...] += reduce_tile(False)

        @pl.when(tile_idx == n_tiles - 1)     # tail tile: masked
        def _():
            acc_ref[...] += reduce_tile(True)
    else:
        @pl.when(tile_idx < n_tiles)          # skip padded (core-split) slots
        def _():
            acc_ref[...] += reduce_tile(False)

    @pl.when(i == pl.num_programs(1) - 1)
    def _():
        out_ref[...] = acc_ref[...].reshape(1, 8, D)


def triplet_loss(inputs, targets=None, *, margin=1.0, reduction="mean",
                 tm=4096, num_cores=None):
    """inputs: stacked (2, B, D) array; inputs[0]=pos_dist, inputs[1]=neg_dist.

    targets is accepted for API parity with the PyTorch module but unused
    (exactly as in the reference forward).
    """
    del targets
    if reduction not in ("mean", "sum"):
        # TODO(synk): reduction='none' would return the full (B, D) loss map;
        # not wired up since the module hardcodes reduction='mean'.
        raise NotImplementedError("only 'mean' and 'sum' reductions implemented")

    two, B, D = inputs.shape
    assert two == 2, "inputs must be stacked as (2, B, D) = [pos_dist, neg_dist]"
    # TODO(synk): if D is not a multiple of 128, a wrapper-side flatten to a
    # lane-dense layout would avoid padded lanes; correctness is unaffected.

    # bf16 inputs: keep elementwise math packed in bf16 (v6e/v7x VPU), widen
    # to f32 only at the accumulate. Other dtypes compute in f32.
    compute_dtype = jnp.bfloat16 if inputs.dtype == jnp.bfloat16 else jnp.float32

    # --- tile sizing -------------------------------------------------------
    bytes_per_elem = inputs.dtype.itemsize
    # Keep the 2 pipeline buffers of the stacked (2, tm, D) block under ~16 MiB
    # (safe even against v7x's 32 MiB scoped VMEM default).
    vmem_budget = 16 * 1024 * 1024
    tm_budget = max(_SLAB, vmem_budget // (2 * 2 * D * bytes_per_elem))
    tm_eff = min(int(tm), _round_up(B, _SLAB), int(tm_budget))
    tm_eff = max(_SLAB, (tm_eff // _SLAB) * _SLAB)

    n_tiles = pl.cdiv(B, tm_eff)
    if num_cores is None:
        num_cores = _num_tensorcores()
    nc = num_cores if (num_cores > 1 and n_tiles >= num_cores) else 1
    steps_per_core = pl.cdiv(n_tiles, nc)
    has_tail = (B % tm_eff) != 0

    def x_index_map(c, i):
        t = c * steps_per_core + i
        # Padding slots clamp onto the last valid tile (DMA elided when the
        # block index repeats); their compute is skipped in-kernel.
        return (0, jnp.minimum(t, n_tiles - 1), 0)

    kernel = functools.partial(
        _triplet_loss_kernel, margin=float(margin), B=B,
        steps_per_core=steps_per_core, n_tiles=n_tiles, has_tail=has_tail,
        compute_dtype=compute_dtype)

    partials = pl.pallas_call(
        kernel,
        out_shape=jax.ShapeDtypeStruct((nc, 8, D), jnp.float32),
        grid_spec=pltpu.PrefetchScalarGridSpec(
            num_scalar_prefetch=0,
            grid=(nc, steps_per_core),
            in_specs=[pl.BlockSpec((2, tm_eff, D), x_index_map)],
            out_specs=pl.BlockSpec((1, 8, D), lambda c, i: (c, 0, 0)),
            scratch_shapes=[pltpu.VMEM((8, D), jnp.float32)],
        ),
        compiler_params=pltpu.CompilerParams(
            dimension_semantics=("parallel", "arbitrary"),
            vmem_limit_bytes=32 * 1024 * 1024,
        ),
    )(inputs)

    total = jnp.sum(partials)  # tiny (nc, 8, D) collapse done by XLA
    if reduction == "mean":
        return total / float(B * D)
    return total


if __name__ == "__main__":
    key = jax.random.PRNGKey(0)
    k_pos, k_neg = jax.random.split(key)

    # Small shapes consistent with the module: inputs[0]/inputs[1] are (B, D).
    B, D = 48, 128
    pos_dist = jax.random.uniform(k_pos, (B, D), dtype=jnp.float32) * 2.0
    neg_dist = jax.random.uniform(k_neg, (B, D), dtype=jnp.float32) * 2.0
    inputs = jnp.stack([pos_dist, neg_dist], axis=0)   # (2, B, D)
    targets = jnp.zeros((B,), dtype=jnp.int32)         # unused, API parity only

    ref_mean = jnp.mean(jnp.maximum(1.0 + pos_dist - neg_dist, 0.0))
    ref_sum = jnp.sum(jnp.maximum(1.0 + pos_dist - neg_dist, 0.0))

    # Default path (single tile, tail-masked since B < tile).
    loss = jax.block_until_ready(triplet_loss(inputs, targets, margin=1.0))
    assert jnp.allclose(loss, ref_mean, rtol=1e-5, atol=1e-6), (loss, ref_mean)

    # 'sum' reduction.
    loss_sum = jax.block_until_ready(
        triplet_loss(inputs, targets, margin=1.0, reduction="sum"))
    assert jnp.allclose(loss_sum, ref_sum, rtol=1e-5, atol=1e-4), (loss_sum, ref_sum)

    # Multi-tile path with a partial tail tile (exercises unmasked + masked paths).
    B2 = 336
    k3, k4 = jax.random.split(jax.random.PRNGKey(1))
    pos2 = jax.random.uniform(k3, (B2, D), dtype=jnp.float32) * 2.0
    neg2 = jax.random.uniform(k4, (B2, D), dtype=jnp.float32) * 2.0
    inputs2 = jnp.stack([pos2, neg2], axis=0)
    ref2 = jnp.mean(jnp.maximum(1.0 + pos2 - neg2, 0.0))
    loss2 = jax.block_until_ready(triplet_loss(inputs2, None, margin=1.0, tm=64))
    assert jnp.allclose(loss2, ref2, rtol=1e-5, atol=1e-6), (loss2, ref2)

    # Explicit 2-way core split with a padded grid slot (odd tile count), no tail.
    B3 = 320
    k5, k6 = jax.random.split(jax.random.PRNGKey(2))
    pos3 = jax.random.uniform(k5, (B3, D), dtype=jnp.float32) * 2.0
    neg3 = jax.random.uniform(k6, (B3, D), dtype=jnp.float32) * 2.0
    inputs3 = jnp.stack([pos3, neg3], axis=0)
    ref3 = jnp.mean(jnp.maximum(1.0 + pos3 - neg3, 0.0))
    loss3 = jax.block_until_ready(
        triplet_loss(inputs3, None, margin=1.0, tm=64, num_cores=2))
    assert jnp.allclose(loss3, ref3, rtol=1e-5, atol=1e-6), (loss3, ref3)

    # bf16 input path (packed elementwise math, f32 accumulation).
    inputs_bf16 = inputs.astype(jnp.bfloat16)
    ref_bf16 = jnp.mean(jnp.maximum(
        1.0 + inputs_bf16[0].astype(jnp.float32)
        - inputs_bf16[1].astype(jnp.float32), 0.0))
    loss_bf16 = jax.block_until_ready(
        triplet_loss(inputs_bf16, targets, margin=1.0))
    assert jnp.allclose(loss_bf16, ref_bf16, rtol=5e-2, atol=5e-3), (loss_bf16, ref_bf16)

    print("KERNEL_OK")
</pallas_src>

<mosaic_0001>
module attributes {stable_mosaic.version = 11 : i64} {
  func.func @_triplet_loss_kernel(%arg0: i32, %arg1: i32, %arg2: memref<2x64x128xf32, #tpu.memory_space<vmem>>, %arg3: memref<1x8x128xf32, #tpu.memory_space<vmem>>, %arg4: memref<8x128xf32, #tpu.memory_space<vmem>>) attributes {dimension_semantics = [#tpu.dimension_semantics<parallel>, #tpu.dimension_semantics<arbitrary>], iteration_bounds = array<i64: 1, 1>, scalar_prefetch = 0 : i64, scratch_operands = 1 : i64, tpu.core_type = #tpu.core_type<tc>, window_params = [{transform_indices = @transform_0, window_bounds = array<i64: 2, 64, 128>}, {transform_indices = @transform_1, window_bounds = array<i64: 1, 8, 128>}]} {
    %c0_i32 = arith.constant 0 : i32
    %0 = arith.cmpi eq, %arg1, %c0_i32 : i32
    %1 = arith.extui %0 : i1 to i32
    %c0_i32_0 = arith.constant 0 : i32
    %2 = arith.cmpi ne, %1, %c0_i32_0 : i32
    scf.if %2 {
      %cst = arith.constant 0.000000e+00 : f32
      %14 = vector.broadcast %cst : f32 to vector<8x128xf32>
      %c0 = arith.constant 0 : index
      %c0_7 = arith.constant 0 : index
      %15 = vector.load %arg4[%c0, %c0_7] : memref<8x128xf32, #tpu.memory_space<vmem>>, vector<8x128xf32>
      tpu.vector_store %arg4[%c0, %c0_7], %14 {strides = array<i32>} : memref<8x128xf32, #tpu.memory_space<vmem>>, vector<8x128xf32>,
    } else {
    }
    %c1_i32 = arith.constant 1 : i32
    %3 = arith.muli %arg0, %c1_i32 : i32
    %4 = arith.addi %3, %arg1 : i32
    %c0_i32_1 = arith.constant 0 : i32
    %5 = arith.cmpi slt, %4, %c0_i32_1 : i32
    %6 = arith.extui %5 : i1 to i32
    %c0_i32_2 = arith.constant 0 : i32
    %7 = arith.cmpi ne, %6, %c0_i32_2 : i32
    scf.if %7 {
      %c0 = arith.constant 0 : index
      %c0_7 = arith.constant 0 : index
      %14 = vector.load %arg4[%c0, %c0_7] : memref<8x128xf32, #tpu.memory_space<vmem>>, vector<8x128xf32>
      %cst = arith.constant 0.000000e+00 : f32
      %15 = vector.broadcast %cst : f32 to vector<8x128xf32>
      %c0_i32_8 = arith.constant 0 : i32
      %c64_i32 = arith.constant 64 : i32
      %16 = arith.muli %c0_i32_8, %c64_i32 : i32
      %17 = tpu.assume_multiple %16, 64 : i32
      %c0_9 = arith.constant 0 : index
      %18 = arith.index_cast %17 : i32 to index
      %c0_10 = arith.constant 0 : index
      %19 = vector.load %arg2[%c0_9, %18, %c0_10] : memref<2x64x128xf32, #tpu.memory_space<vmem>>, vector<1x64x128xf32>
      %20 = vector.shape_cast %19 : vector<1x64x128xf32> to vector<64x128xf32>
      %c1 = arith.constant 1 : index
      %21 = arith.index_cast %17 : i32 to index
      %c0_11 = arith.constant 0 : index
      %22 = vector.load %arg2[%c1, %21, %c0_11] : memref<2x64x128xf32, #tpu.memory_space<vmem>>, vector<1x64x128xf32>
      %23 = vector.shape_cast %22 : vector<1x64x128xf32> to vector<64x128xf32>
      %cst_12 = arith.constant 1.000000e+00 : f32
      %24 = vector.broadcast %cst_12 : f32 to vector<64x128xf32>
      %25 = arith.addf %24, %20 : vector<64x128xf32>
      %26 = arith.subf %25, %23 : vector<64x128xf32>
      %cst_13 = arith.constant 0.000000e+00 : f32
      %27 = vector.broadcast %cst_13 : f32 to vector<64x128xf32>
      %28 = arith.maximumf %26, %27 : vector<64x128xf32>
      %29 = vector.shape_cast %28 : vector<64x128xf32> to vector<8x8x128xf32>
      %cst_14 = arith.constant dense<0.000000e+00> : vector<8x128xf32>
      %30 = vector.multi_reduction <add>, %29, %cst_14 [0] : vector<8x8x128xf32> to vector<8x128xf32>
      %31 = arith.addf %15, %30 : vector<8x128xf32>
      %c1_i32_15 = arith.constant 1 : i32
      %32 = arith.addf %14, %31 : vector<8x128xf32>
      %c0_16 = arith.constant 0 : index
      %c0_17 = arith.constant 0 : index
      %33 = vector.load %arg4[%c0_16, %c0_17] : memref<8x128xf32, #tpu.memory_space<vmem>>, vector<8x128xf32>
      tpu.vector_store %arg4[%c0_16, %c0_17], %32 {strides = array<i32>} : memref<8x128xf32, #tpu.memory_space<vmem>>, vector<8x128xf32>,
    } else {
    }
    %c0_i32_3 = arith.constant 0 : i32
    %8 = arith.cmpi eq, %4, %c0_i32_3 : i32
    %9 = arith.extui %8 : i1 to i32
    %c0_i32_4 = arith.constant 0 : i32
    %10 = arith.cmpi ne, %9, %c0_i32_4 : i32
    scf.if %10 {
      %c0 = arith.constant 0 : index
      %c0_7 = arith.constant 0 : index
      %14 = vector.load %arg4[%c0, %c0_7] : memref<8x128xf32, #tpu.memory_space<vmem>>, vector<8x128xf32>
      %cst = arith.constant 0.000000e+00 : f32
      %15 = vector.broadcast %cst : f32 to vector<8x128xf32>
      %c0_i32_8 = arith.constant 0 : i32
      %c64_i32 = arith.constant 64 : i32
      %16 = arith.muli %c0_i32_8, %c64_i32 : i32
      %17 = tpu.assume_multiple %16, 64 : i32
      %c0_9 = arith.constant 0 : index
      %18 = arith.index_cast %17 : i32 to index
      %c0_10 = arith.constant 0 : index
      %19 = vector.load %arg2[%c0_9, %18, %c0_10] : memref<2x64x128xf32, #tpu.memory_space<vmem>>, vector<1x64x128xf32>
      %20 = vector.shape_cast %19 : vector<1x64x128xf32> to vector<64x128xf32>
      %c1 = arith.constant 1 : index
      %21 = arith.index_cast %17 : i32 to index
      %c0_11 = arith.constant 0 : index
      %22 = vector.load %arg2[%c1, %21, %c0_11] : memref<2x64x128xf32, #tpu.memory_space<vmem>>, vector<1x64x128xf32>
      %23 = vector.shape_cast %22 : vector<1x64x128xf32> to vector<64x128xf32>
      %cst_12 = arith.constant 1.000000e+00 : f32
      %24 = vector.broadcast %cst_12 : f32 to vector<64x128xf32>
      %25 = arith.addf %24, %20 : vector<64x128xf32>
      %26 = arith.subf %25, %23 : vector<64x128xf32>
      %cst_13 = arith.constant 0.000000e+00 : f32
      %27 = vector.broadcast %cst_13 : f32 to vector<64x128xf32>
      %28 = arith.maximumf %26, %27 : vector<64x128xf32>
      %c64_i32_14 = arith.constant 64 : i32
      %29 = arith.muli %4, %c64_i32_14 : i32
      %30 = arith.addi %29, %17 : i32
      %31 = tpu.iota {dimensions = array<i32: 0>} : vector<64x128xi32>
      %32 = vector.broadcast %30 : i32 to vector<64x128xi32>
      %33 = arith.addi %32, %31 : vector<64x128xi32>
      %c48_i32 = arith.constant 48 : i32
      %34 = vector.broadcast %c48_i32 : i32 to vector<64x128xi32>
      %35 = arith.cmpi slt, %33, %34 : vector<64x128xi32>
      %cst_15 = arith.constant 0.000000e+00 : f32
      %36 = vector.broadcast %cst_15 : f32 to vector<64x128xf32>
      %37 = arith.select %35, %28, %36 : vector<64x128xi1>, vector<64x128xf32>
      %38 = vector.shape_cast %37 : vector<64x128xf32> to vector<8x8x128xf32>
      %cst_16 = arith.constant dense<0.000000e+00> : vector<8x128xf32>
      %39 = vector.multi_reduction <add>, %38, %cst_16 [0] : vector<8x8x128xf32> to vector<8x128xf32>
      %40 = arith.addf %15, %39 : vector<8x128xf32>
      %c1_i32_17 = arith.constant 1 : i32
      %41 = arith.addf %14, %40 : vector<8x128xf32>
      %c0_18 = arith.constant 0 : index
      %c0_19 = arith.constant 0 : index
      %42 = vector.load %arg4[%c0_18, %c0_19] : memref<8x128xf32, #tpu.memory_space<vmem>>, vector<8x128xf32>
      tpu.vector_store %arg4[%c0_18, %c0_19], %41 {strides = array<i32>} : memref<8x128xf32, #tpu.memory_space<vmem>>, vector<8x128xf32>,
    } else {
    }
    %c0_i32_5 = arith.constant 0 : i32
    %11 = arith.cmpi eq, %arg1, %c0_i32_5 : i32
    %12 = arith.extui %11 : i1 to i32
    %c0_i32_6 = arith.constant 0 : i32
    %13 = arith.cmpi ne, %12, %c0_i32_6 : i32
    scf.if %13 {
      %c0 = arith.constant 0 : index
      %c0_7 = arith.constant 0 : index
      %14 = vector.load %arg4[%c0, %c0_7] : memref<8x128xf32, #tpu.memory_space<vmem>>, vector<8x128xf32>
      %15 = vector.shape_cast %14 : vector<8x128xf32> to vector<1x8x128xf32>
      %c0_8 = arith.constant 0 : index
      %c0_9 = arith.constant 0 : index
      %c0_10 = arith.constant 0 : index
      %16 = vector.load %arg3[%c0_8, %c0_9, %c0_10] : memref<1x8x128xf32, #tpu.memory_space<vmem>>, vector<1x8x128xf32>
      tpu.vector_store %arg3[%c0_8, %c0_9, %c0_10], %15 {strides = array<i32>} : memref<1x8x128xf32, #tpu.memory_space<vmem>>, vector<1x8x128xf32>,
    } else {
    }
    return
  }
  func.func @transform_0(%arg0: i32, %arg1: i32) -> (i32, i32, i32) {
    %c1_i32 = arith.constant 1 : i32
    %0 = arith.muli %arg0, %c1_i32 : i32
    %1 = arith.addi %0, %arg1 : i32
    %c0_i32 = arith.constant 0 : i32
    %2 = arith.minsi %1, %c0_i32 : i32
    %c0_i32_0 = arith.constant 0 : i32
    %c0_i32_1 = arith.constant 0 : i32
    %c0_i32_2 = arith.constant 0 : i32
    return %c0_i32_0, %2, %c0_i32_1 : i32, i32, i32
  }
  func.func @transform_1(%arg0: i32, %arg1: i32) -> (i32, i32, i32) {
    %c0_i32 = arith.constant 0 : i32
    %c0_i32_0 = arith.constant 0 : i32
    %c0_i32_1 = arith.constant 0 : i32
    return %arg0, %c0_i32, %c0_i32_0 : i32, i32, i32
  }
}

</mosaic_0001>

<llo_original>
// kernel: tpu_custom_call.1
$region0: #{tpu_custom_call.1}
  #allocation0 [shape = 'u32[]', space=smem, size = 0x4, offset = 0x4, fixed_abs, tag = 'smem constant byte address 0x4 - core index']
  #allocation1 [shape = 'u32[144,128]{1,0:T(1,128)}', space=vmem, size = 0x12000, scoped, tag = 'internal scratch']
  #allocation2 [shape = 'f32[8,128]{1,0:T(8,128)}', space=vmem, size = 0x1000, scoped, tag = 'scratch operand']
  #allocation7 [shape = 's32[]', space=sflag, size = 0x4, offset = 0, fixed_abs, tag = 'sflag constant byte address 0x0 - dummy sync flag']
  %s0 = inlined_call_operand.hbm [shape: f32[2,48,128], index: 0, kind: input, shape index: {}]
  %s1 = inlined_call_operand.hbm [shape: f32[1,8,128], index: 1, kind: output, shape index: {}]
  %s2 = sld [smem:[#allocation0]]
  $region34: #{tpu_custom_call.1} parent=0
    _
  %s4 = ssub.s32 1, %s2
  %s5 = scalar_select 0, %s4, %s2
  $region1: #{tpu_custom_call.1} parent=0
    #allocation3 [shape = 'u8[65536]{0}', space=vmem, size = 0x10000, scoped, tag = 'input window, operand 0, single buffered']
    #allocation4 [shape = 's32[1]{0}', space=sflag, size = 0x4, scoped, tag = 'scoped memory for tpu_custom_call.1']
    #allocation5 [shape = 's32[1]{0}', space=sflag, size = 0x4, scoped, tag = 'scoped memory for tpu_custom_call.1']
    #allocation6 [shape = 'u8[4096]{0}', space=vmem, size = 0x1000, scoped, tag = 'output window, operand 0, single buffered']
    %6 = vsyncpa [#allocation4], 0
    %7 = vsyncpa [#allocation5], 0
    // Predicated region
    $region2: #{tpu_custom_call.1} parent=1 // pred_check
      _
    $region3: #{tpu_custom_call.1} parent=1 // pred_check_branch
      %9 = sbr.rel (0) target = $region5
    $region4: #{tpu_custom_call.1} parent=1 // pred_region
      #allocation8 [shape = 'u32[6]{0}', space=smem, size = 0x18, scoped, tag = 'DMA stride descriptor']
      %s10 = sadd.s32 0, 0
      %p11 = scmp.lt.s32.totalorder %s10, 0
      %s12 = scalar_select %p11, %s10, 0
      %s13 = smul.u32 8, %s12
      %s14 = ssub.s32 6, %s13
      %s15 = smul.u32 256, %s14
      %s17 = ssub.s32 2048, %s15
      %18 = vsyncadd [#allocation4], %s17
      %p19 = scmp.ne.s32.totalorder 0, %s15
      %s20 = smul.addr %s13, 128
      %s21 = scalar_lea.hbm %s0, %s20
      %s22 = smul.u32 8, %s14
      %s23 = smul.u32 %s22, 2
      %s25 = sshll.u32 1, 14
      %s26 = sxor.u32 4294967295, %s25
      %s28 = sld [smem:[#allocation0]]
      %s29 = sadd.s32 2, %s28
      %s31 = sshll.u32 7, 26
      %s32 = sxor.u32 4294967295, %s31
      %s33 = sand.u32 0, %s32
      %s34 = sshll.u32 %s29, 26
      %s35 = sor.u32 %s33, %s34
      %s36 = sshll.u32 [#allocation3], 4
      %s37 = int_to_ptr.vmem [resolvable:$true] %s36
      %s38 = sshll.u32 %s23, 4
      %43 = sst [smem:[#allocation8]] 768
      %s44 = scalar_lea.smem [#allocation8], 1
      %45 = sst [smem:[%s44]] 1024
      %s46 = scalar_lea.smem [#allocation8], 2
      %47 = sst [smem:[%s46]] %s14
      %s48 = scalar_lea.smem [#allocation8], 3
      %49 = sst [smem:[%s48]] 128
      %s50 = scalar_lea.smem [#allocation8], 4
      %51 = sst [smem:[%s50]] 128
      %s52 = scalar_lea.smem [#allocation8], 5
      %53 = sst [smem:[%s52]] 8
      %55 = dma.general (%p19), %s21, %s38, %s37, [#allocation4], 131072, [#allocation8], %s35, 0
    $region5: #{tpu_custom_call.1} parent=1 // pred_fallthru
      _
    // Predicated region
    $region6: #{tpu_custom_call.1} parent=1 // pred_check
      _
    $region7: #{tpu_custom_call.1} parent=1 // pred_check_branch
      %57 = sbr.rel (0) target = $region9
    $region8: #{tpu_custom_call.1} parent=1 // pred_region
      %58 = dma.done [#allocation4], 2048
    $region9: #{tpu_custom_call.1} parent=1 // pred_fallthru
      _
    %s59 = sadd.s32 0, 0
    %p60 = scmp.lt.s32.totalorder %s59, 0
    %s61 = scalar_select %p60, %s59, 0
    %s62 = smul.u32 8, %s61
    %s63 = ssub.s32 6, %s62
    %s64 = smul.u32 256, %s63
    %p65 = scmp.eq.s32.totalorder 0, 0
    // Predicated region
    $region10: #{tpu_custom_call.1} parent=1 // pred_check
      %p66 = pneg %p65
    $region11: #{tpu_custom_call.1} parent=1 // pred_check_branch
      %68 = sbr.rel (%p66) target = $region13
    $region12: #{tpu_custom_call.1} parent=1 // pred_region
      %69 = vst [vmem:[#allocation2] sm:$0xff] 0.0
    $region13: #{tpu_custom_call.1} parent=1 // pred_fallthru
      _
    %s70 = sadd.s32 0, 0
    %p71 = scmp.lt.s32.totalorder %s70, 0
    // Predicated region
    $region14: #{tpu_custom_call.1} parent=1 // pred_check
      %p72 = pneg %p71
    $region15: #{tpu_custom_call.1} parent=1 // pred_check_branch
      %74 = sbr.rel (%p72) target = $region17
    $region16: #{tpu_custom_call.1} parent=1 // pred_region
      %v75 = vld [vmem:[#allocation2] sm:$0xff]
      %v76 = vld [vmem:[#allocation3] sm:$0xff]
      %v77 = vld [vmem:[#allocation3 + $0x8] sm:$0xff]
      %v78 = vld [vmem:[#allocation3 + $0x10] sm:$0xff]
      %v79 = vld [vmem:[#allocation3 + $0x18] sm:$0xff]
      %v80 = vld [vmem:[#allocation3 + $0x20] sm:$0xff]
      %v81 = vld [vmem:[#allocation3 + $0x28] sm:$0xff]
      %v82 = vld [vmem:[#allocation3 + $0x30] sm:$0xff]
      %v83 = vld [vmem:[#allocation3 + $0x38] sm:$0xff]
      %s84 = sadd.s32 0, 64
      %s85 = scalar_lea.vmem [#allocation3], %s84
      %v86 = vld [vmem:[%s85] sm:$0xff]
      %v87 = vld [vmem:[%s85 + $0x8] sm:$0xff]
      %v88 = vld [vmem:[%s85 + $0x10] sm:$0xff]
      %v89 = vld [vmem:[%s85 + $0x18] sm:$0xff]
      %v90 = vld [vmem:[%s85 + $0x20] sm:$0xff]
      %v91 = vld [vmem:[%s85 + $0x28] sm:$0xff]
      %v92 = vld [vmem:[%s85 + $0x30] sm:$0xff]
      %v93 = vld [vmem:[%s85 + $0x38] sm:$0xff]
      %v94 = vadd.f32 %v76, 1.0
      %v95 = vadd.f32 %v77, 1.0
      %v96 = vadd.f32 %v78, 1.0
      %v97 = vadd.f32 %v79, 1.0
      %v98 = vadd.f32 %v80, 1.0
      %v99 = vadd.f32 %v81, 1.0
      %v100 = vadd.f32 %v82, 1.0
      %v101 = vadd.f32 %v83, 1.0
      %v102 = vsub.f32 %v94, %v86
      %v103 = vsub.f32 %v95, %v87
      %v104 = vsub.f32 %v96, %v88
      %v105 = vsub.f32 %v97, %v89
      %v106 = vsub.f32 %v98, %v90
      %v107 = vsub.f32 %v99, %v91
      %v108 = vsub.f32 %v100, %v92
      %v109 = vsub.f32 %v101, %v93
      %v110 = vmax.f32 %v102, 0.0
      %v111 = vmax.f32 %v103, 0.0
      %v112 = vmax.f32 %v104, 0.0
      %v113 = vmax.f32 %v105, 0.0
      %v114 = vmax.f32 %v106, 0.0
      %v115 = vmax.f32 %v107, 0.0
      %v116 = vmax.f32 %v108, 0.0
      %v117 = vmax.f32 %v109, 0.0
      %v118 = vadd.f32 %v110, %v111
      %v119 = vadd.f32 %v118, %v112
      %v120 = vadd.f32 %v119, %v113
      %v121 = vadd.f32 %v120, %v114
      %v122 = vadd.f32 %v121, %v115
      %v123 = vadd.f32 %v122, %v116
      %v124 = vadd.f32 %v123, %v117
      %v125 = vadd.f32 %v124, 0.0
      %v126 = vadd.f32 %v75, %v125
      %127 = vst [vmem:[#allocation2] sm:$0xff] %v126
    $region17: #{tpu_custom_call.1} parent=1 // pred_fallthru
      _
    %p128 = scmp.eq.s32.totalorder %s70, 0
    // Predicated region
    $region18: #{tpu_custom_call.1} parent=1 // pred_check
      %p129 = pneg %p128
    $region19: #{tpu_custom_call.1} parent=1 // pred_check_branch
      %131 = sbr.rel (%p129) target = $region21
    $region20: #{tpu_custom_call.1} parent=1 // pred_region
      %v132 = vld [vmem:[#allocation2] sm:$0xff]
      %v133 = vld [vmem:[#allocation3] sm:$0xff]
      %v134 = vld [vmem:[#allocation3 + $0x8] sm:$0xff]
      %v135 = vld [vmem:[#allocation3 + $0x10] sm:$0xff]
      %v136 = vld [vmem:[#allocation3 + $0x18] sm:$0xff]
      %v137 = vld [vmem:[#allocation3 + $0x20] sm:$0xff]
      %v138 = vld [vmem:[#allocation3 + $0x28] sm:$0xff]
      %v139 = vld [vmem:[#allocation3 + $0x30] sm:$0xff]
      %v140 = vld [vmem:[#allocation3 + $0x38] sm:$0xff]
      %s141 = sadd.s32 0, 64
      %s142 = scalar_lea.vmem [#allocation3], %s141
      %v143 = vld [vmem:[%s142] sm:$0xff]
      %v144 = vld [vmem:[%s142 + $0x8] sm:$0xff]
      %v145 = vld [vmem:[%s142 + $0x10] sm:$0xff]
      %v146 = vld [vmem:[%s142 + $0x18] sm:$0xff]
      %v147 = vld [vmem:[%s142 + $0x20] sm:$0xff]
      %v148 = vld [vmem:[%s142 + $0x28] sm:$0xff]
      %v149 = vld [vmem:[%s142 + $0x30] sm:$0xff]
      %v150 = vld [vmem:[%s142 + $0x38] sm:$0xff]
      %v151 = vadd.f32 %v133, 1.0
      %v152 = vadd.f32 %v134, 1.0
      %v153 = vadd.f32 %v135, 1.0
      %v154 = vadd.f32 %v136, 1.0
      %v155 = vadd.f32 %v137, 1.0
      %v156 = vadd.f32 %v138, 1.0
      %v157 = vadd.f32 %v139, 1.0
      %v158 = vadd.f32 %v140, 1.0
      %v159 = vsub.f32 %v151, %v143
      %v160 = vsub.f32 %v152, %v144
      %v161 = vsub.f32 %v153, %v145
      %v162 = vsub.f32 %v154, %v146
      %v163 = vsub.f32 %v155, %v147
      %v164 = vsub.f32 %v156, %v148
      %v165 = vsub.f32 %v157, %v149
      %v166 = vsub.f32 %v158, %v150
      %v167 = vmax.f32 %v159, 0.0
      %v168 = vmax.f32 %v160, 0.0
      %v169 = vmax.f32 %v161, 0.0
      %v170 = vmax.f32 %v162, 0.0
      %v171 = vmax.f32 %v163, 0.0
      %v172 = vmax.f32 %v164, 0.0
      %v173 = vmax.f32 %v165, 0.0
      %v174 = vmax.f32 %v166, 0.0
      %s175 = smul.u32 %s70, 64
      %s176 = sadd.s32 %s175, 0
      %v177 = vlaneseq
      %v178 = vshrl.u32 %v177, 7
      %v179 = vadd.s32 %v178, 8
      %v180 = vadd.s32 %v178, 16
      %v181 = vadd.s32 %v178, 24
      %v182 = vadd.s32 %v178, 32
      %v183 = vadd.s32 %v178, 40
      %v184 = vadd.s32 %v178, 48
      %v185 = vadd.s32 %v178, 56
      %v186 = vstv %s176
      %v187 = vadd.s32 %v186, %v178
      %v188 = vadd.s32 %v186, %v179
      %v189 = vadd.s32 %v186, %v180
      %v190 = vadd.s32 %v186, %v181
      %v191 = vadd.s32 %v186, %v182
      %v192 = vadd.s32 %v186, %v183
      %v193 = vadd.s32 %v186, %v184
      %v194 = vadd.s32 %v186, %v185
      %vm195 = vcmp.lt.s32.totalorder %v187, 48
      %vm196 = vcmp.lt.s32.totalorder %v188, 48
      %vm197 = vcmp.lt.s32.totalorder %v189, 48
      %vm198 = vcmp.lt.s32.totalorder %v190, 48
      %vm199 = vcmp.lt.s32.totalorder %v191, 48
      %vm200 = vcmp.lt.s32.totalorder %v192, 48
      %vm201 = vcmp.lt.s32.totalorder %v193, 48
      %vm202 = vcmp.lt.s32.totalorder %v194, 48
      %v203 = vsel %vm195, %v167, 0.0
      %v204 = vsel %vm196, %v168, 0.0
      %v205 = vsel %vm197, %v169, 0.0
      %v206 = vsel %vm198, %v170, 0.0
      %v207 = vsel %vm199, %v171, 0.0
      %v208 = vsel %vm200, %v172, 0.0
      %v209 = vsel %vm201, %v173, 0.0
      %v210 = vsel %vm202, %v174, 0.0
      %v211 = vadd.f32 %v203, %v204
      %v212 = vadd.f32 %v211, %v205
      %v213 = vadd.f32 %v212, %v206
      %v214 = vadd.f32 %v213, %v207
      %v215 = vadd.f32 %v214, %v208
      %v216 = vadd.f32 %v215, %v209
      %v217 = vadd.f32 %v216, %v210
      %v218 = vadd.f32 %v217, 0.0
      %v219 = vadd.f32 %v132, %v218
      %220 = vst [vmem:[#allocation2] sm:$0xff] %v219
    $region21: #{tpu_custom_call.1} parent=1 // pred_fallthru
      _
    // Predicated region
    $region22: #{tpu_custom_call.1} parent=1 // pred_check
      %p221 = pneg %p65
    $region23: #{tpu_custom_call.1} parent=1 // pred_check_branch
      %223 = sbr.rel (%p221) target = $region25
    $region24: #{tpu_custom_call.1} parent=1 // pred_region
      %v224 = vld [vmem:[#allocation2] sm:$0xff]
      %225 = vst [vmem:[#allocation6] sm:$0xff] %v224
    $region25: #{tpu_custom_call.1} parent=1 // pred_fallthru
      _
    // Predicated region
    $region26: #{tpu_custom_call.1} parent=1 // pred_check
      _
    $region27: #{tpu_custom_call.1} parent=1 // pred_check_branch
      %227 = sbr.rel (0) target = $region29
    $region28: #{tpu_custom_call.1} parent=1 // pred_region
      %s229 = ssub.s32 128, 128
      %230 = vsyncadd [#allocation5], %s229
      %s232 = sshll.u32 [#allocation6], 4
      %s233 = int_to_ptr.vmem [resolvable:$true] %s232
      %235 = dma.vmem_to_hbm [thread:$0]  %s233, 128, %s1, [#allocation5]
    $region29: #{tpu_custom_call.1} parent=1 // pred_fallthru
      _
    // Predicated region
    $region30: #{tpu_custom_call.1} parent=1 // pred_check
      _
    $region31: #{tpu_custom_call.1} parent=1 // pred_check_branch
      %237 = sbr.rel (0) target = $region33
    $region32: #{tpu_custom_call.1} parent=1 // pred_region
      %238 = dma.done [#allocation5], 128
    $region33: #{tpu_custom_call.1} parent=1 // pred_fallthru
      _
    %239 = vsyncpa [#allocation4], 1
    %240 = vsyncpa [#allocation5], 1

</llo_original>
